<compile_context>
chip_gen: v7x
topology: tpu7x:2x2x1
jax: 0.10.0
libtpu: 0.0.40
codegen_flags: <defaults>
</compile_context>

<pallas_src>
import math
import numpy as np
import jax
import jax.numpy as jnp
from jax.experimental import pallas as pl
from jax.experimental.pallas import tpu as pltpu

# ------------------------- module hyper-parameters -------------------------
SAMPLE_RATE = 16000
N_FFT = 1024
WIN_LENGTH = 1024
HOP_LENGTH = 320
N_MELS = 80
N_FREQS = N_FFT // 2 + 1                       # 513 (onesided bins incl. Nyquist)
N_BINS = N_FFT // 2                            # 512 kept bins (Nyquist dropped)
PAD = (WIN_LENGTH - HOP_LENGTH) // 2           # 352
N_MELS_PAD = 128                               # lane-dense output width

# frame tiling
MAX_TILE_M = 512
TARGET_GRID_STEPS = 4                          # ">=4 steps ideally" (2-TC v7x)

# slice-based framing constants
CHUNK = math.gcd(N_FFT, HOP_LENGTH)            # 64
F_CHUNKS = N_FFT // CHUNK                      # 16 chunks per frame
H_CHUNKS = HOP_LENGTH // CHUNK                 # 5 chunks per hop


# --------------------- deterministic parameter construction ----------------
def _hz_to_mel_slaney(hz):
    hz = np.asarray(hz, dtype=np.float64)
    f_sp = 200.0 / 3.0
    min_log_hz = 1000.0
    min_log_mel = min_log_hz / f_sp
    logstep = math.log(6.4) / 27.0
    lin = hz / f_sp
    log_part = min_log_mel + np.log(np.maximum(hz, 1e-10) / min_log_hz) / logstep
    return np.where(hz >= min_log_hz, log_part, lin)


def _mel_to_hz_slaney(mel):
    mel = np.asarray(mel, dtype=np.float64)
    f_sp = 200.0 / 3.0
    min_log_hz = 1000.0
    min_log_mel = min_log_hz / f_sp
    logstep = math.log(6.4) / 27.0
    lin = f_sp * mel
    log_part = min_log_hz * np.exp(logstep * (mel - min_log_mel))
    return np.where(mel >= min_log_mel, log_part, lin)


def _melscale_fbanks_slaney(n_freqs, n_mels, sample_rate, f_min=0.0, f_max=None):
    # Mirrors torchaudio.functional.melscale_fbanks(norm='slaney', mel_scale='slaney')
    if f_max is None:
        f_max = sample_rate / 2.0
    all_freqs = np.linspace(0.0, sample_rate // 2, n_freqs)
    m_min = _hz_to_mel_slaney(f_min)
    m_max = _hz_to_mel_slaney(f_max)
    m_pts = np.linspace(m_min, m_max, n_mels + 2)
    f_pts = _mel_to_hz_slaney(m_pts)
    f_diff = f_pts[1:] - f_pts[:-1]                       # (n_mels+1,)
    slopes = f_pts[None, :] - all_freqs[:, None]          # (n_freqs, n_mels+2)
    down = -slopes[:, :-2] / f_diff[:-1]
    up = slopes[:, 2:] / f_diff[1:]
    fb = np.maximum(0.0, np.minimum(down, up))            # (n_freqs, n_mels)
    enorm = 2.0 / (f_pts[2 : n_mels + 2] - f_pts[:n_mels])
    fb = fb * enorm[None, :]
    return fb.astype(np.float32)


def _build_constants():
    n = np.arange(N_FFT, dtype=np.float64)
    k = np.arange(N_BINS, dtype=np.float64)               # k = 0..511 (Nyquist dropped)
    ang = 2.0 * np.pi * np.outer(n, k) / N_FFT
    hann = 0.5 - 0.5 * np.cos(2.0 * np.pi * n / N_FFT)    # periodic Hann, folded in
    dft_cos = np.cos(ang) * hann[:, None]                 # (1024, 512)
    dft_sin = np.sin(ang) * hann[:, None]                 # (1024, 512) (+sin: only |.| used)
    dft_w = np.concatenate([dft_cos, dft_sin], axis=1)    # (1024, 1024) = [cos | sin]

    fb = _melscale_fbanks_slaney(N_FREQS, N_MELS, SAMPLE_RATE)   # (513, 80)
    # The Slaney top filter's upper edge is f_max, so the Nyquist (8 kHz) row
    # contributes (numerically) nothing — verify before dropping it.
    assert float(np.abs(fb[N_FREQS - 1]).max()) < 1e-8, "Nyquist mel row not ~0"
    fb_pad = np.zeros((N_BINS, N_MELS_PAD), dtype=np.float32)
    fb_pad[:, :N_MELS] = fb[:N_BINS]
    return (jnp.asarray(dft_w, dtype=jnp.bfloat16),
            jnp.asarray(fb_pad, dtype=jnp.bfloat16))


DFT_W, MEL_FB = _build_constants()


# ------------------------------- Pallas kernel ------------------------------
def _logmel_kernel(frames_ref, dft_ref, fb_ref, out_ref):
    # frames_ref: (TILE_M, N_FFT)        bf16
    # dft_ref:    (N_FFT, 2*N_BINS)      bf16   [windowed cos | windowed sin]
    # fb_ref:     (N_BINS, N_MELS_PAD)   bf16
    # out_ref:    (TILE_M, N_MELS_PAD)   f32
    y = jnp.dot(frames_ref[...], dft_ref[...], preferred_element_type=jnp.float32)
    re = y[:, :N_BINS]                         # lane-aligned static slices: free views
    im = y[:, N_BINS:]
    pwr = re * re + im * im
    # magnitude = sqrt(pwr) via EUP rsqrt; eps guards padded / silent frames
    mag = pwr * jax.lax.rsqrt(pwr + 1e-30)
    mel = jnp.dot(mag.astype(jnp.bfloat16), fb_ref[...],
                  preferred_element_type=jnp.float32)
    out_ref[...] = jnp.log(jnp.maximum(mel, 1e-5))


# ------------------------------- host wrapper --------------------------------
def _pick_tile_m(m: int) -> int:
    """Multiple of 8, <= MAX_TILE_M, aiming for >= TARGET_GRID_STEPS grid steps."""
    tile = -(-m // TARGET_GRID_STEPS)          # ceil(m / target_steps)
    tile = ((tile + 7) // 8) * 8               # sublane multiple
    return max(8, min(MAX_TILE_M, tile))


def _frame_signal(wav_p: jnp.ndarray, num_frames: int) -> jnp.ndarray:
    """Gather-free overlapped framing via strided slices of 64-sample chunks.

    frames[b, f, c*64:(c+1)*64] = wav_p[b, f*HOP + c*64 : f*HOP + (c+1)*64]
    Returns (B, num_frames, N_FFT) in bf16.
    """
    B = wav_p.shape[0]
    needed = (num_frames - 1) * HOP_LENGTH + N_FFT          # multiple of CHUNK
    chunks = wav_p[:, :needed].astype(jnp.bfloat16).reshape(B, needed // CHUNK, CHUNK)
    last = (num_frames - 1) * H_CHUNKS + 1
    parts = [chunks[:, c : c + last : H_CHUNKS, :] for c in range(F_CHUNKS)]
    return jnp.concatenate(parts, axis=2)                   # (B, F, N_FFT)


@jax.jit
def log_mel_spectrogram(wav: jnp.ndarray) -> jnp.ndarray:
    """wav: (B, T) float32  ->  logmel: (B, N_MELS, num_frames) float32."""
    B, T = wav.shape
    # reflect pad (matches torch.nn.functional.pad(..., 'reflect'))
    wav_p = jnp.pad(wav, ((0, 0), (PAD, PAD)), mode="reflect")
    t_padded = T + 2 * PAD
    num_frames = 1 + (t_padded - N_FFT) // HOP_LENGTH

    frames = _frame_signal(wav_p, num_frames)                # (B, F, N_FFT) bf16

    # collapse (B, F) into one M axis, adaptively tile, pad to tile multiple
    m = B * num_frames
    frames = frames.reshape(m, N_FFT)
    tile_m = _pick_tile_m(m)
    m_pad = -(-m // tile_m) * tile_m
    if m_pad != m:
        frames = jnp.pad(frames, ((0, m_pad - m), (0, 0)))

    out = pl.pallas_call(
        _logmel_kernel,
        out_shape=jax.ShapeDtypeStruct((m_pad, N_MELS_PAD), jnp.float32),
        grid=(m_pad // tile_m,),
        in_specs=[
            pl.BlockSpec((tile_m, N_FFT), lambda i: (i, 0)),
            # constants: grid-invariant index_map -> single-buffer them
            pl.BlockSpec((N_FFT, 2 * N_BINS), lambda i: (0, 0),
                         pipeline_mode=pl.Buffered(buffer_count=1)),
            pl.BlockSpec((N_BINS, N_MELS_PAD), lambda i: (0, 0),
                         pipeline_mode=pl.Buffered(buffer_count=1)),
        ],
        out_specs=pl.BlockSpec((tile_m, N_MELS_PAD), lambda i: (i, 0)),
        compiler_params=pltpu.CompilerParams(
            dimension_semantics=("parallel",),     # shards M tiles across v7x's 2 TCs
            vmem_limit_bytes=32 * 1024 * 1024,     # explicit: v5e default scoped is 16 MiB
        ),
    )(frames, DFT_W, MEL_FB)

    # strip padding, restore (B, n_mels, frames) to match the torch module
    logmel = out[:m, :N_MELS].reshape(B, num_frames, N_MELS)
    return jnp.transpose(logmel, (0, 2, 1))


# ----------------------------------- main -----------------------------------
if __name__ == "__main__":
    key = jax.random.PRNGKey(0)
    B, T = 2, 4096
    wav = jax.random.normal(key, (B, T), dtype=jnp.float32)

    logmel = jax.block_until_ready(log_mel_spectrogram(wav))

    expected_frames = 1 + (T + 2 * PAD - N_FFT) // HOP_LENGTH
    assert logmel.shape == (B, N_MELS, expected_frames), logmel.shape
    assert logmel.dtype == jnp.float32
    assert bool(jnp.all(jnp.isfinite(logmel)))
    print("KERNEL_OK")
</pallas_src>

<mosaic_0001>
module attributes {stable_mosaic.version = 11 : i64} {
  func.func @_logmel_kernel(%arg0: i32, %arg1: memref<8x1024xbf16, #tpu.memory_space<vmem>>, %arg2: memref<1024x1024xbf16, #tpu.memory_space<vmem>>, %arg3: memref<512x128xbf16, #tpu.memory_space<vmem>>, %arg4: memref<8x128xf32, #tpu.memory_space<vmem>>) attributes {dimension_semantics = [#tpu.dimension_semantics<parallel>], iteration_bounds = array<i64: 3>, scalar_prefetch = 0 : i64, scratch_operands = 0 : i64, tpu.core_type = #tpu.core_type<tc>, window_params = [{transform_indices = @transform_0, window_bounds = array<i64: 8, 1024>}, {pipeline_mode = #tpu.pipeline_mode<synchronous>, transform_indices = @transform_1, window_bounds = array<i64: 1024, 1024>}, {pipeline_mode = #tpu.pipeline_mode<synchronous>, transform_indices = @transform_2, window_bounds = array<i64: 512, 128>}, {transform_indices = @transform_3, window_bounds = array<i64: 8, 128>}]} {
    %c0 = arith.constant 0 : index
    %c0_0 = arith.constant 0 : index
    %0 = vector.load %arg1[%c0, %c0_0] : memref<8x1024xbf16, #tpu.memory_space<vmem>>, vector<8x1024xbf16>
    %c0_1 = arith.constant 0 : index
    %c0_2 = arith.constant 0 : index
    %1 = vector.load %arg2[%c0_1, %c0_2] : memref<1024x1024xbf16, #tpu.memory_space<vmem>>, vector<1024x1024xbf16>
    %cst = arith.constant dense<0.000000e+00> : vector<8x1024xf32>
    %2 = tpu.matmul %0, %1, %cst {dimension_numbers = #tpu.dot_dimension_numbers<[1], [0], [0], [1], [0, 0, 1, 1], [], []>} : vector<8x1024xbf16>, vector<1024x1024xbf16>, vector<8x1024xf32> -> vector<8x1024xf32>
    %3 = vector.extract_strided_slice %2 {offsets = [0, 0], sizes = [8, 512], strides = [1, 1]} : vector<8x1024xf32> to vector<8x512xf32>
    %4 = vector.extract_strided_slice %2 {offsets = [0, 512], sizes = [8, 512], strides = [1, 1]} : vector<8x1024xf32> to vector<8x512xf32>
    %5 = arith.mulf %3, %3 : vector<8x512xf32>
    %6 = arith.mulf %4, %4 : vector<8x512xf32>
    %7 = arith.addf %5, %6 : vector<8x512xf32>
    %cst_3 = arith.constant 1.000000e-30 : f32
    %8 = vector.broadcast %cst_3 : f32 to vector<8x512xf32>
    %9 = arith.addf %7, %8 : vector<8x512xf32>
    %10 = math.rsqrt %9 : vector<8x512xf32>
    %11 = arith.mulf %7, %10 : vector<8x512xf32>
    %12 = arith.truncf %11 : vector<8x512xf32> to vector<8x512xbf16>
    %c0_4 = arith.constant 0 : index
    %c0_5 = arith.constant 0 : index
    %13 = vector.load %arg3[%c0_4, %c0_5] : memref<512x128xbf16, #tpu.memory_space<vmem>>, vector<512x128xbf16>
    %cst_6 = arith.constant dense<0.000000e+00> : vector<8x128xf32>
    %14 = tpu.matmul %12, %13, %cst_6 {dimension_numbers = #tpu.dot_dimension_numbers<[1], [0], [0], [1], [0, 0, 1, 1], [], []>} : vector<8x512xbf16>, vector<512x128xbf16>, vector<8x128xf32> -> vector<8x128xf32>
    %cst_7 = arith.constant 9.99999974E-6 : f32
    %15 = vector.broadcast %cst_7 : f32 to vector<8x128xf32>
    %16 = arith.maximumf %14, %15 : vector<8x128xf32>
    %17 = math.log %16 : vector<8x128xf32>
    %c0_8 = arith.constant 0 : index
    %c0_9 = arith.constant 0 : index
    %18 = vector.load %arg4[%c0_8, %c0_9] : memref<8x128xf32, #tpu.memory_space<vmem>>, vector<8x128xf32>
    tpu.vector_store %arg4[%c0_8, %c0_9], %17 {strides = array<i32>} : memref<8x128xf32, #tpu.memory_space<vmem>>, vector<8x128xf32>,
    return
  }
  func.func @transform_0(%arg0: i32) -> (i32, i32) {
    %c0_i32 = arith.constant 0 : i32
    %c0_i32_0 = arith.constant 0 : i32
    return %arg0, %c0_i32 : i32, i32
  }
  func.func @transform_1(%arg0: i32) -> (i32, i32) {
    %c0_i32 = arith.constant 0 : i32
    %c0_i32_0 = arith.constant 0 : i32
    %c0_i32_1 = arith.constant 0 : i32
    return %c0_i32, %c0_i32_0 : i32, i32
  }
  func.func @transform_2(%arg0: i32) -> (i32, i32) {
    %c0_i32 = arith.constant 0 : i32
    %c0_i32_0 = arith.constant 0 : i32
    %c0_i32_1 = arith.constant 0 : i32
    return %c0_i32, %c0_i32_0 : i32, i32
  }
  func.func @transform_3(%arg0: i32) -> (i32, i32) {
    %c0_i32 = arith.constant 0 : i32
    %c0_i32_0 = arith.constant 0 : i32
    return %arg0, %c0_i32 : i32, i32
  }
}

</mosaic_0001>

<llo_original>
// kernel: reverse.1
$region0: #{reverse.1}
  %s0 = inlined_call_operand.vmem [shape: bf16[2,384], index: 0, kind: input, shape index: {}]
  %s1 = inlined_call_operand.vmem [shape: bf16[2,384], index: 1, kind: output, shape index: {}]
  %v2 = vlaneseq
  %v3 = vsub.s32 127, %v2
  %4 = vset.pattern.permute.xlu0 %v3
  $region1: #{reverse.1} parent=0
    #allocation0 [shape = 'u8[4096]{0}', space=vmem, size = 0x1000, scoped, tag = 'operand span for operand 0']
    #allocation1 [shape = 'u8[1024]{0}', space=vmem, size = 0x400, scoped, tag = 'packed  for operand 0']
    #allocation2 [shape = 'u8[4096]{0}', space=vmem, size = 0x1000, scoped, tag = 'operand span for operand 1']
    #allocation3 [shape = 'u8[1024]{0}', space=vmem, size = 0x400, scoped, tag = 'packed  for operand 1']
    loop: start=0, step=1, limit=5
    $region2: #{reverse.1} parent=1 // loop_pre_header
      _
    $region3: #{reverse.1} parent=1 // loop_header
      %s6 = sphi 0, %s10
      %p7 = scmp.ge.s32.totalorder %s6, 5
      %s13 = sphi 0, %s25
      %s14 = sphi 0, %s21
      %s15 = sphi 0, %s13
      %s16 = sphi 0, %s14
      %s17 = sphi 0, %s15
      %s18 = sphi 0, %s16
    $region4: #{reverse.1} parent=1 // loop_header_branch
      %9 = sbr.rel (%p7) target = $region8
    $region5: #{reverse.1} parent=1 // loop_body
      %s11 = ssub.s32 %s6, 1
      %s12 = ssub.s32 %s6, 2
      %s19 = sadd.s32 1, %s14
      %p20 = scmp.ge.s32.totalorder %s19, 3
      %s21 = scalar_select %p20, 0, %s19
      %s22 = sadd.s32 1, %s13
      %s23 = scalar_select %p20, %s22, %s13
      %p24 = scmp.ge.s32.totalorder %s23, 1
      %s25 = scalar_select %p24, 0, %s23
      %p26 = scmp.le.s32.totalorder 1, %s6
      %p27 = scmp.lt.s32.totalorder %s6, 4
      %p28 = pnand %p26, %p27
      %p29 = pneg %p28
      // Predicated region
      $region9: #{reverse.1} parent=5 // pred_check
        _
      $region10: #{reverse.1} parent=5 // pred_check_branch
        %31 = sbr.rel (%p28) target = $region12
      $region11: #{reverse.1} parent=5 // pred_region
        %s32 = ssub.s32 %s6, 1
      $region12: #{reverse.1} parent=5 // pred_fallthru
        _
      %p33 = scmp.lt.s32.totalorder %s6, 3
      // Predicated region
      $region13: #{reverse.1} parent=5 // pred_check
        %p34 = pneg %p33
      $region14: #{reverse.1} parent=5 // pred_check_branch
        %36 = sbr.rel (%p34) target = $region16
      $region15: #{reverse.1} parent=5 // pred_region
        %s37 = sand.u32 %s6, 1
        %s38 = sand.u32 %s6, 1
        %s39 = scalar_lea.vmem [#allocation1], %s38
        %s40 = ssub.s32 2, %s14
        %s41 = smul.addr %s13, 3
        %s42 = sadd.s32 %s40, %s41
        %s43 = scalar_lea.vmem %s0, %s42
        // Predicated region
        $region17: #{reverse.1} parent=15 // pred_check
          _
        $region18: #{reverse.1} parent=15 // pred_check_branch
          %45 = sbr.rel (0) target = $region20
        $region19: #{reverse.1} parent=15 // pred_region
          // Predicated region
          $region21: #{reverse.1} parent=19 // pred_check
            _
          $region22: #{reverse.1} parent=19 // pred_check_branch
            %47 = sbr.rel target = $region24
          $region23: #{reverse.1} parent=19 // pred_region
            // Predicated region
            $region36: #{reverse.1} parent=23 // pred_check
              _
            $region37: #{reverse.1} parent=23 // pred_check_branch
              %62 = sbr.rel (0) target = $region39
            $region38: #{reverse.1} parent=23 // pred_region
              loop: start=0, step=1, limit=1
              $region40: #{reverse.1} parent=38 // loop_pre_header
                _
              $region41: #{reverse.1} parent=38 // loop_header
                %s65 = sphi 0, %s69
                %p66 = scmp.ge.s32.totalorder %s65, 1
                %s70 = sphi %s43, %s43
                %s71 = sphi %s39, %s39
              $region42: #{reverse.1} parent=38 // loop_header_branch
                %68 = sbr.rel (%p66) target = $region46
              $region43: #{reverse.1} parent=38 // loop_body
                %v72 = vld [vmem:[%s70] sm:$0x1]
                %73 = vst [vmem:[%s71] sm:$0x1] %v72
              $region44: #{reverse.1} parent=38 // loop_footer
                %s69 = sadd.s32 1, %s65
              $region45: #{reverse.1} parent=38 // loop_footer_branch
                %64 = sbr.rel target = $region41
              $region46: #{reverse.1} parent=38 // loop_exit
                _
            $region39: #{reverse.1} parent=23 // pred_fallthru
              _
          $region24: #{reverse.1} parent=19 // pred_fallthru
            _
          // Predicated region
          $region25: #{reverse.1} parent=19 // pred_check
            _
          $region26: #{reverse.1} parent=19 // pred_check_branch
            %49 = sbr.rel (0) target = $region28
          $region27: #{reverse.1} parent=19 // pred_region
            loop: start=0, step=1, limit=1
            $region29: #{reverse.1} parent=27 // loop_pre_header
              _
            $region30: #{reverse.1} parent=27 // loop_header
              %s52 = sphi 0, %s56
              %p53 = scmp.ge.s32.totalorder %s52, 1
              %s57 = sphi %s43, %s43
              %s58 = sphi %s39, %s39
            $region31: #{reverse.1} parent=27 // loop_header_branch
              %55 = sbr.rel (%p53) target = $region35
            $region32: #{reverse.1} parent=27 // loop_body
              %v59 = vld [vmem:[%s57] sm:$0x1]
              %60 = vst [vmem:[%s58] sm:$0x1] %v59
            $region33: #{reverse.1} parent=27 // loop_footer
              %s56 = sadd.s32 1, %s52
            $region34: #{reverse.1} parent=27 // loop_footer_branch
              %51 = sbr.rel target = $region30
            $region35: #{reverse.1} parent=27 // loop_exit
              _
          $region28: #{reverse.1} parent=19 // pred_fallthru
            _
        $region20: #{reverse.1} parent=15 // pred_fallthru
          _
        %74 = vnop
      $region16: #{reverse.1} parent=5 // pred_fallthru
        _
      %p75 = scmp.le.s32.totalorder 1, %s6
      %p76 = scmp.lt.s32.totalorder %s6, 4
      %p77 = pnand %p75, %p76
      %p78 = pneg %p77
      // Predicated region
      $region47: #{reverse.1} parent=5 // pred_check
        _
      $region48: #{reverse.1} parent=5 // pred_check_branch
        %80 = sbr.rel (%p77) target = $region50
      $region49: #{reverse.1} parent=5 // pred_region
        %s81 = ssub.s32 %s6, 1
        %s82 = sand.u32 %s11, 1
        %s83 = sand.u32 %s11, 1
        %s84 = scalar_lea.vmem [#allocation1], %s83
        %s85 = sand.u32 %s11, 1
        %s86 = sand.u32 %s11, 1
        %s87 = scalar_lea.vmem [#allocation1], %s86
        %s88 = sand.u32 %s11, 1
        %s89 = sand.u32 %s11, 1
        %s90 = scalar_lea.vmem [#allocation3], %s89
        %s92 = smul.u32 1, 2
        %s93 = sshllo.u32 0, %s92
        %s94 = sshrl.u32 %s93, 1
        %s95 = sor.u32 %s93, %s94
        %s96 = sand.u32 %s95, 85
        %s97 = sshrl.u32 %s96, 1
        %s98 = sor.u32 %s96, %s97
        %s99 = sand.u32 51, %s98
        %s100 = sshrl.u32 %s99, 2
        %s101 = sor.u32 %s99, %s100
        %s102 = sand.u32 15, %s101
        %v103 = vld [vmem:[%s87] sm:%s102]
        %v104 = vunpack.c.l.bf16 %v103
        %v105 = vunpack.c.h.bf16 %v103
        %106 = vst [vmem:[#allocation0] sm:%s93] %v104
        %s107 = ssub.s32 2, %s16
        %v108 = vld [vmem:[#allocation0] sm:$0xff]
        %109 = vperm.xlu0 %4, %v108
        %v110 = vpop.permute.xlu0 %109
        %111 = vst [vmem:[#allocation2] sm:$0xff] %v110
        %s113 = smul.u32 1, 2
        %s114 = sshllo.u32 0, %s113
        %s115 = sshrl.u32 %s113, 1
        %v116 = vld [vmem:[#allocation2] sm:%s114]
        %v117 = vpack.c.bf16 0.0, %v116
        %s118 = sshllo.u32 0, %s115
        %119 = vst [vmem:[%s90] sm:%s118] %v117
        %s120 = sand.u32 %s11, 1
        %s121 = sand.u32 %s11, 1
        %s122 = scalar_lea.vmem [#allocation3], %s121
        %s123 = smul.addr %s15, 3
        %s124 = sadd.s32 %s16, %s123
        %s125 = scalar_lea.vmem %s1, %s124
        // Predicated region
        $region51: #{reverse.1} parent=49 // pred_check
          _
        $region52: #{reverse.1} parent=49 // pred_check_branch
          %127 = sbr.rel (0) target = $region54
        $region53: #{reverse.1} parent=49 // pred_region
          // Predicated region
          $region55: #{reverse.1} parent=53 // pred_check
            _
          $region56: #{reverse.1} parent=53 // pred_check_branch
            %129 = sbr.rel target = $region58
          $region57: #{reverse.1} parent=53 // pred_region
            // Predicated region
            $region70: #{reverse.1} parent=57 // pred_check
              _
            $region71: #{reverse.1} parent=57 // pred_check_branch
              %144 = sbr.rel (0) target = $region73
            $region72: #{reverse.1} parent=57 // pred_region
              loop: start=0, step=1, limit=1
              $region74: #{reverse.1} parent=72 // loop_pre_header
                _
              $region75: #{reverse.1} parent=72 // loop_header
                %s147 = sphi 0, %s151
                %p148 = scmp.ge.s32.totalorder %s147, 1
                %s152 = sphi %s122, %s122
                %s153 = sphi %s125, %s125
              $region76: #{reverse.1} parent=72 // loop_header_branch
                %150 = sbr.rel (%p148) target = $region80
              $region77: #{reverse.1} parent=72 // loop_body
                %v154 = vld [vmem:[%s152] sm:$0x1]
                %155 = vst [vmem:[%s153] sm:$0x1] %v154
              $region78: #{reverse.1} parent=72 // loop_footer
                %s151 = sadd.s32 1, %s147
              $region79: #{reverse.1} parent=72 // loop_footer_branch
                %146 = sbr.rel target = $region75
              $region80: #{reverse.1} parent=72 // loop_exit
                _
            $region73: #{reverse.1} parent=57 // pred_fallthru
              _
          $region58: #{reverse.1} parent=53 // pred_fallthru
            _
          // Predicated region
          $region59: #{reverse.1} parent=53 // pred_check
            _
          $region60: #{reverse.1} parent=53 // pred_check_branch
            %131 = sbr.rel (0) target = $region62
          $region61: #{reverse.1} parent=53 // pred_region
            loop: start=0, step=1, limit=1
            $region63: #{reverse.1} parent=61 // loop_pre_header
              _
            $region64: #{reverse.1} parent=61 // loop_header
              %s134 = sphi 0, %s138
              %p135 = scmp.ge.s32.totalorder %s134, 1
              %s139 = sphi %s122, %s122
              %s140 = sphi %s125, %s125
            $region65: #{reverse.1} parent=61 // loop_header_branch
              %137 = sbr.rel (%p135) target = $region69
            $region66: #{reverse.1} parent=61 // loop_body
              %v141 = vld [vmem:[%s139] sm:$0x1]
              %142 = vst [vmem:[%s140] sm:$0x1] %v141
            $region67: #{reverse.1} parent=61 // loop_footer
              %s138 = sadd.s32 1, %s134
            $region68: #{reverse.1} parent=61 // loop_footer_branch
              %133 = sbr.rel target = $region64
            $region69: #{reverse.1} parent=61 // loop_exit
              _
          $region62: #{reverse.1} parent=53 // pred_fallthru
            _
        $region54: #{reverse.1} parent=49 // pred_fallthru
          _
        %156 = vnop
      $region50: #{reverse.1} parent=5 // pred_fallthru
        _
      %p157 = scmp.le.s32.totalorder 2, %s6
      // Predicated region
      $region81: #{reverse.1} parent=5 // pred_check
        %p158 = pneg %p157
      $region82: #{reverse.1} parent=5 // pred_check_branch
        %160 = sbr.rel (%p158) target = $region84
      $region83: #{reverse.1} parent=5 // pred_region
        %s161 = ssub.s32 %s6, 2
        %s162 = sand.u32 %s12, 1
        %s163 = sand.u32 %s12, 1
        %s164 = scalar_lea.vmem [#allocation3], %s163
      $region84: #{reverse.1} parent=5 // pred_fallthru
        _
    $region6: #{reverse.1} parent=1 // loop_footer
      %s10 = sadd.s32 1, %s6
    $region7: #{reverse.1} parent=1 // loop_footer_branch
      %5 = sbr.rel target = $region3
    $region8: #{reverse.1} parent=1 // loop_exit
      _

</llo_original>
